<compile_context>
chip_gen: v7x
topology: tpu7x:2x2x1
jax: 0.10.0
libtpu: 0.0.40
codegen_flags: <defaults>
</compile_context>

<pallas_src>
import jax
import jax.numpy as jnp
from jax.experimental import pallas as pl
from jax.experimental.pallas import tpu as pltpu


# --------------------------------------------------------------------------
# First-layer embedding: Linear(C, E) + ReLU   (row-tiled, "parallel" grid)
# --------------------------------------------------------------------------

def _embed_kernel(x_ref, w_ref, b_ref, o_ref):
    xb = x_ref[...].astype(jnp.bfloat16)
    o_ref[...] = jnp.maximum(
        jnp.dot(xb, w_ref[...], preferred_element_type=jnp.float32)
        + b_ref[...], 0.0)


def first_layer_embedding(x, w_bf16, b):
    # x: (B, T, N, C) -> (B, T, N, E)
    B, T, N, C = x.shape
    E = w_bf16.shape[1]
    rows = B * T * N
    # Row tile: multiple of 8; >= 2 blocks when possible (v7x has 2 TCs).
    tr = 128 if (rows % 128 == 0 and rows >= 256) else rows
    x2d = x.reshape(rows, C)
    out = pl.pallas_call(
        _embed_kernel,
        out_shape=jax.ShapeDtypeStruct((rows, E), jnp.float32),
        grid=(rows // tr,),
        in_specs=[
            pl.BlockSpec((tr, C), lambda i: (i, 0)),
            pl.BlockSpec((C, E), lambda i: (0, 0)),
            pl.BlockSpec((1, E), lambda i: (0, 0)),
        ],
        out_specs=pl.BlockSpec((tr, E), lambda i: (i, 0)),
        compiler_params=pltpu.CompilerParams(
            dimension_semantics=("parallel",)),
    )(x2d, w_bf16, b)
    return out.reshape(B, T, N, E)


# --------------------------------------------------------------------------
# Fused STSGCL layer (one grid-free call; whole batch folded into matmul M):
#   pos-emb add + gated temporal conv + window-batched STSGCM + residual add
# --------------------------------------------------------------------------

def _make_layer_kernel(B, T, N, F, Lg):
    Tw = T - 3
    V = 4 * N
    K = Tw * F          # fused lane width of the GCN stack: (window, feature)

    def kernel(x_ref, temb_ref, semb_ref, wg_ref, bg_ref, adj_ref,
               gw_ref, gb_ref, o_ref):
        # --- position embedding (temporal + spatial), f32 elementwise -------
        x = x_ref[...] + temb_ref[...] + semb_ref[...]          # (B, T, N, F)
        xb = x.astype(jnp.bfloat16)                              # MXU operand

        # --- gated temporal conv: ONE (B*Tw*N, 2F) @ (2F, 2F) matmul --------
        # Conv2d(F, F, kernel=(1,2), dilation=(1,3)) in feature-last form:
        #   z[t] = [x[t] | x[t+3]] @ [Wg0 ; Wg1] + bg
        x0 = xb[:, :Tw].reshape(B * Tw * N, F)
        x3 = xb[:, 3:3 + Tw].reshape(B * Tw * N, F)
        xc = jnp.concatenate([x0, x3], axis=1)                   # (B*Tw*N, 2F)
        z = (jnp.dot(xc, wg_ref[...], preferred_element_type=jnp.float32)
             + bg_ref[...])
        res = (jax.nn.sigmoid(z[:, :F]) * jnp.tanh(z[:, F:])
               ).reshape(B, Tw, N, F)                            # data_res

        # --- window-batched STSGCM -------------------------------------------
        # H: rows = (b, 4N vertices), lanes = (window, feature) -> (B*4N, Tw*F)
        h = jnp.concatenate(
            [xb[:, w:w + 4].reshape(B * V, F) for w in range(Tw)],
            axis=1)                                              # (B*V, K) bf16
        adj = adj_ref[...]                                       # (4N, 4N) bf16
        best = None
        for l in range(Lg):        # Lg is small (2); static unroll is cheap
            # adjacency matmul batched over ALL windows at once (lanes),
            # static loop over the (small) batch for the vertex contraction.
            ax = jnp.concatenate(
                [jnp.dot(adj, h[b * V:(b + 1) * V],
                         preferred_element_type=jnp.float32)
                 for b in range(B)], axis=0)                     # (B*V, K) f32
            # per-window GCN weights fused into one block-diagonal matmul;
            # output columns are ordered [all GLU-lhs | all GLU-rhs].
            zz = (jnp.dot(ax.astype(jnp.bfloat16), gw_ref[l],
                          preferred_element_type=jnp.float32)
                  + gb_ref[l])                                   # (B*V, 2K)
            hf = zz[:, :K] * jax.nn.sigmoid(zz[:, K:])           # GLU, (B*V, K)
            sl = hf.reshape(B, V, K)[:, N:2 * N]                 # (B, N, K)
            best = sl if best is None else jnp.maximum(best, sl)
            if l + 1 < Lg:
                h = hf.astype(jnp.bfloat16)

        # --- rearrange (B, N, (w,f)) -> (B, Tw, N, F), residual, ONE store ---
        gcn_out = jnp.concatenate(
            [best[:, :, w * F:(w + 1) * F].reshape(B, 1, N, F)
             for w in range(Tw)], axis=1)                        # (B, Tw, N, F)
        o_ref[...] = gcn_out + res

    return kernel


def stsgcl_layer(x, lp, adj_bf16):
    # x: (B, T, N, F) -> (B, T-3, N, F)
    B, T, N, F = x.shape
    Tw = T - 3
    Lg = lp["gcn_W"].shape[0]
    kernel = _make_layer_kernel(B, T, N, F, Lg)
    # Whole batch folded into one call: best for the single TC on v5e/v6e.
    # TODO(synk): on v7x (2 TCs) split batch/windows into 2 "parallel" blocks.
    return pl.pallas_call(
        kernel,
        out_shape=jax.ShapeDtypeStruct((B, Tw, N, F), jnp.float32),
    )(x, lp["t_emb"], lp["s_emb"], lp["wg"], lp["bg"], adj_bf16,
      lp["gcn_W"], lp["gcn_B"])


# --------------------------------------------------------------------------
# Output layer: (B,T,N,F) -> fc1(K=T*F) -> ReLU -> fc2 -> (B, P, N)
# --------------------------------------------------------------------------

def _make_output_kernel(T, N, F, H, P):
    def kernel(x_ref, w1_ref, b1_ref, w2_ref, b2_ref, o_ref):
        x = x_ref[...]                                           # (B, T, N, F)
        B = x.shape[0]
        # (B,T,N,F) -> (B*N, T*F) with lane order (t, f): one K=T*F matmul
        xt = jnp.concatenate(
            [x[:, t].reshape(B * N, F) for t in range(T)], axis=1
        ).astype(jnp.bfloat16)
        h = jnp.maximum(
            jnp.dot(xt, w1_ref[...], preferred_element_type=jnp.float32)
            + b1_ref[...], 0.0)                                  # (B*N, H)
        out = (jnp.dot(h.astype(jnp.bfloat16), w2_ref[...],
                       preferred_element_type=jnp.float32)
               + b2_ref[...])                                    # (B*N, P)
        o_ref[...] = out.reshape(B, N, P)
    return kernel


def output_layer(x, w1, b1, w2, b2):
    # x: (B, T, N, F) -> (B, P, N)
    B, T, N, F = x.shape
    H = w1.shape[1]
    P = w2.shape[1]
    out = pl.pallas_call(
        _make_output_kernel(T, N, F, H, P),
        out_shape=jax.ShapeDtypeStruct((B, N, P), jnp.float32),
    )(x, w1, b1, w2, b2)
    # Final (B, N, P) -> (B, P, N) permute left to XLA (tiny).
    return jnp.transpose(out, (0, 2, 1))


# --------------------------------------------------------------------------
# Parameter init + forward (glue)
# --------------------------------------------------------------------------

def init_params(key, *, num_nodes, input_dim, horizon, num_layers, filters,
                first_layer_embedding_size, predict_length, num_of_filters=128):
    def nrm(k, shape, scale=0.1):
        return scale * jax.random.normal(k, shape, dtype=jnp.float32)

    keys = iter(jax.random.split(key, 256))
    V4 = 4 * num_nodes
    params = {"num_nodes": num_nodes}

    # adj * mask is computed once at construction (use_mask=True in reference);
    # stored bf16 (only ever an MXU operand).
    adj = nrm(next(keys), (V4, V4))
    mask = jnp.ones((V4, V4), dtype=jnp.float32)
    params["adj"] = (adj * mask).astype(jnp.bfloat16)

    E = first_layer_embedding_size
    params["emb_w"] = nrm(next(keys), (input_dim, E)).astype(jnp.bfloat16)
    params["emb_b"] = nrm(next(keys), (1, E))

    layers = []
    input_length = horizon
    F = E
    for idx in range(num_layers):
        f = filters[idx]
        assert all(fi == F for fi in f), \
            "filters must equal num_of_features (see TODO on residual 1x1 conv)"
        Lg = len(f)
        Tw = input_length - 3
        K = Tw * F

        # gated temporal conv: fuse the two (F, 2F) weights (slices t, t+3)
        # into one (2F, 2F) operand; output cols [:F]=sigmoid gate, [F:]=tanh.
        wg0 = nrm(next(keys), (F, 2 * F))
        wg1 = nrm(next(keys), (F, 2 * F))
        wg = jnp.concatenate([wg0, wg1], axis=0).astype(jnp.bfloat16)
        bg = nrm(next(keys), (1, 2 * F))

        # Per-window STSGCM weights -> block-diagonal fused weights.
        #   gcn_W[l] : (Tw*F, 2*Tw*F); lanes ordered (window, feature);
        #   output columns ordered [all GLU-lhs blocks | all GLU-rhs blocks].
        gcn_w = nrm(next(keys), (Tw, Lg, F, 2 * F))
        gcn_b = nrm(next(keys), (Tw, Lg, 2 * F))
        eye = jnp.eye(Tw, dtype=jnp.float32)
        Ws, Bs = [], []
        for l in range(Lg):
            g = gcn_w[:, l]                                      # (Tw, F, 2F)
            w_lhs = jnp.einsum('wio,wv->wivo', g[..., :F], eye).reshape(K, K)
            w_rhs = jnp.einsum('wio,wv->wivo', g[..., F:], eye).reshape(K, K)
            Ws.append(jnp.concatenate([w_lhs, w_rhs], axis=1))   # (K, 2K)
            b = gcn_b[:, l]                                      # (Tw, 2F)
            Bs.append(jnp.concatenate([b[:, :F].reshape(-1),
                                       b[:, F:].reshape(-1)]))   # (2K,)
        lp = {
            "t_emb": nrm(next(keys), (1, input_length, 1, F)),
            "s_emb": nrm(next(keys), (1, 1, num_nodes, F)),
            "wg": wg,
            "bg": bg,
            "gcn_W": jnp.stack(Ws).astype(jnp.bfloat16),         # (Lg, K, 2K)
            "gcn_B": jnp.stack(Bs)[:, None, :],                  # (Lg, 1, 2K)
        }
        layers.append(lp)
        input_length -= 3
        F = f[-1]
    params["layers"] = layers

    TF = input_length * F
    params["out_w1"] = nrm(next(keys), (TF, num_of_filters)).astype(jnp.bfloat16)
    params["out_b1"] = nrm(next(keys), (1, num_of_filters))
    params["out_w2"] = nrm(next(keys),
                           (num_of_filters, predict_length)).astype(jnp.bfloat16)
    params["out_b2"] = nrm(next(keys), (1, predict_length))
    return params


def stsgcn_forward(params, x):
    # x: (B, T, N, C) feature-last
    x = first_layer_embedding(x, params["emb_w"], params["emb_b"])

    for lp in params["layers"]:
        # TODO(synk): the reference's channel-mismatch branch builds a fresh
        # nn.Conv2d(1x1) with random weights inside forward(); we require
        # filters[-1] == num_of_features so that branch is never taken.
        x = stsgcl_layer(x, lp, params["adj"])

    return output_layer(x, params["out_w1"], params["out_b1"],
                        params["out_w2"], params["out_b2"])


# --------------------------------------------------------------------------

if __name__ == "__main__":
    key = jax.random.PRNGKey(0)
    k_param, k_x = jax.random.split(key)

    num_nodes = 16
    input_dim = 8
    horizon = 8
    num_layers = 2
    feat = 32
    filters = [[feat, feat], [feat, feat]]
    predict_length = 12
    batch = 2

    params = init_params(
        k_param,
        num_nodes=num_nodes, input_dim=input_dim, horizon=horizon,
        num_layers=num_layers, filters=filters,
        first_layer_embedding_size=feat, predict_length=predict_length)

    x = jax.random.normal(k_x, (batch, horizon, num_nodes, input_dim),
                          dtype=jnp.float32)

    out = stsgcn_forward(params, x)
    out = jax.block_until_ready(out)
    assert out.shape == (batch, predict_length, num_nodes), out.shape
    assert bool(jnp.all(jnp.isfinite(out)))
    print("KERNEL_OK")
</pallas_src>

<mosaic_0001>
module attributes {stable_mosaic.version = 11 : i64} {
  func.func @_embed_kernel(%arg0: i32, %arg1: memref<128x8xf32, #tpu.memory_space<vmem>>, %arg2: memref<8x32xbf16, #tpu.memory_space<vmem>>, %arg3: memref<1x32xf32, #tpu.memory_space<vmem>>, %arg4: memref<128x32xf32, #tpu.memory_space<vmem>>) attributes {dimension_semantics = [#tpu.dimension_semantics<parallel>], iteration_bounds = array<i64: 2>, scalar_prefetch = 0 : i64, scratch_operands = 0 : i64, tpu.core_type = #tpu.core_type<tc>, window_params = [{transform_indices = @transform_0, window_bounds = array<i64: 128, 8>}, {pipeline_mode = #tpu.pipeline_mode<synchronous>, transform_indices = @transform_1, window_bounds = array<i64: 8, 32>}, {pipeline_mode = #tpu.pipeline_mode<synchronous>, transform_indices = @transform_2, window_bounds = array<i64: 1, 32>}, {transform_indices = @transform_3, window_bounds = array<i64: 128, 32>}]} {
    %c0 = arith.constant 0 : index
    %c0_0 = arith.constant 0 : index
    %0 = vector.load %arg1[%c0, %c0_0] : memref<128x8xf32, #tpu.memory_space<vmem>>, vector<128x8xf32>
    %1 = arith.truncf %0 : vector<128x8xf32> to vector<128x8xbf16>
    %c0_1 = arith.constant 0 : index
    %c0_2 = arith.constant 0 : index
    %2 = vector.load %arg2[%c0_1, %c0_2] : memref<8x32xbf16, #tpu.memory_space<vmem>>, vector<8x32xbf16>
    %cst = arith.constant dense<0.000000e+00> : vector<128x32xf32>
    %3 = tpu.matmul %1, %2, %cst {dimension_numbers = #tpu.dot_dimension_numbers<[1], [0], [0], [1], [0, 0, 1, 1], [], []>} : vector<128x8xbf16>, vector<8x32xbf16>, vector<128x32xf32> -> vector<128x32xf32>
    %c0_3 = arith.constant 0 : index
    %c0_4 = arith.constant 0 : index
    %4 = vector.load %arg3[%c0_3, %c0_4] : memref<1x32xf32, #tpu.memory_space<vmem>>, vector<1x32xf32>
    %5 = vector.broadcast %4 : vector<1x32xf32> to vector<128x32xf32>
    %6 = arith.addf %3, %5 : vector<128x32xf32>
    %cst_5 = arith.constant 0.000000e+00 : f32
    %7 = vector.broadcast %cst_5 : f32 to vector<128x32xf32>
    %8 = arith.maximumf %6, %7 : vector<128x32xf32>
    %c0_6 = arith.constant 0 : index
    %c0_7 = arith.constant 0 : index
    %9 = vector.load %arg4[%c0_6, %c0_7] : memref<128x32xf32, #tpu.memory_space<vmem>>, vector<128x32xf32>
    tpu.vector_store %arg4[%c0_6, %c0_7], %8 {strides = array<i32>} : memref<128x32xf32, #tpu.memory_space<vmem>>, vector<128x32xf32>,
    return
  }
  func.func @transform_0(%arg0: i32) -> (i32, i32) {
    %c0_i32 = arith.constant 0 : i32
    %c0_i32_0 = arith.constant 0 : i32
    return %arg0, %c0_i32 : i32, i32
  }
  func.func @transform_1(%arg0: i32) -> (i32, i32) {
    %c0_i32 = arith.constant 0 : i32
    %c0_i32_0 = arith.constant 0 : i32
    %c0_i32_1 = arith.constant 0 : i32
    return %c0_i32, %c0_i32_0 : i32, i32
  }
  func.func @transform_2(%arg0: i32) -> (i32, i32) {
    %c0_i32 = arith.constant 0 : i32
    %c0_i32_0 = arith.constant 0 : i32
    %c0_i32_1 = arith.constant 0 : i32
    return %c0_i32, %c0_i32_0 : i32, i32
  }
  func.func @transform_3(%arg0: i32) -> (i32, i32) {
    %c0_i32 = arith.constant 0 : i32
    %c0_i32_0 = arith.constant 0 : i32
    return %arg0, %c0_i32 : i32, i32
  }
}

</mosaic_0001>

<llo_original>
// kernel: tpu_custom_call.1
$region0: #{tpu_custom_call.1}
  #allocation0 [shape = 'u32[]', space=smem, size = 0x4, offset = 0x4, fixed_abs, tag = 'smem constant byte address 0x4 - core index']
  #allocation1 [shape = 'u32[144,128]{1,0:T(1,128)}', space=vmem, size = 0x12000, scoped, tag = 'internal scratch']
  %s0 = inlined_call_operand.vmem [shape: f32[256,8], index: 0, kind: input, shape index: {}]
  %s1 = inlined_call_operand.vmem [shape: bf16[8,32], index: 1, kind: input, shape index: {}]
  %s2 = inlined_call_operand.vmem [shape: f32[1,32], index: 2, kind: input, shape index: {}]
  %s3 = inlined_call_operand.vmem [shape: f32[256,32], index: 3, kind: output, shape index: {}]
  %s4 = sld [smem:[#allocation0]]
  $region45: #{tpu_custom_call.1} parent=0
    _
  %s6 = ssub.s32 1, %s4
  %s7 = scalar_select 0, %s6, %s4
  loop: start=0, step=1, limit=4
  $region2: #{tpu_custom_call.1} parent=0 // loop_pre_header
    _
  $region3: #{tpu_custom_call.1} parent=0 // loop_header
    %s9 = sphi 0, %s13
    %p10 = scmp.ge.s32.totalorder %s9, 4
    %s19 = sphi 0, %s21
    %s22 = sphi 0, %s19
    %s23 = sphi 0, %s22
    %s39 = sphi 0, %s23
    %s43 = sphi 0, %s43
    %s45 = sphi 0, %s43
    %s46 = sphi 0, %s45
    %s60 = sphi 0, %s46
    %s64 = sphi 0, %s64
    %s66 = sphi 0, %s64
    %s67 = sphi 0, %s66
    %s81 = sphi 0, %s67
    %s87 = sphi 0, %s89
    %s90 = sphi 0, %s87
    %s91 = sphi 0, %s90
    %s107 = sphi 0, %s91
  $region4: #{tpu_custom_call.1} parent=0 // loop_header_branch
    %12 = sbr.rel (%p10) target = $region8
  $region5: #{tpu_custom_call.1} parent=0 // loop_body
    %s14 = ssub.s32 %s9, 1
    %s15 = ssub.s32 %s9, 2
    %s16 = sadd.s32 %s9, 1
    %s17 = ssub.s32 %s9, %s16
    %p18 = scmp.eq.s32.totalorder %s17, 0
    %s20 = sadd.s32 %s19, 1
    %s21 = scalar_select %p18, %s19, %s20
    %p24 = pneg %p18
    %p25 = scmp.eq.s32.totalorder %s9, 1
    %p26 = por %p24, %p25
    %p27 = scmp.ne.s32.totalorder %s19, %s22
    %p28 = scmp.eq.s32.totalorder %s9, 0
    %p29 = por %p27, %p28
    %p30 = scmp.ne.s32.totalorder %s19, %s22
    %p31 = scmp.eq.s32.totalorder %s14, 1
    %p32 = por %p30, %p31
    %p33 = scmp.ne.s32.totalorder %s22, %s23
    %p34 = scmp.eq.s32.totalorder %s14, 0
    %p35 = por %p33, %p34
    %p36 = scmp.ne.s32.totalorder %s22, %s23
    %p37 = scmp.eq.s32.totalorder %s15, 1
    %p38 = por %p36, %p37
    %p40 = scmp.ne.s32.totalorder %s23, %s39
    %p41 = scmp.eq.s32.totalorder %s15, 0
    %p42 = por %p40, %p41
    %s44 = sadd.s32 %s43, 1
    %p47 = scmp.eq.s32.totalorder %s9, 1
    %p48 = scmp.ne.s32.totalorder %s43, %s45
    %p49 = scmp.eq.s32.totalorder %s9, 0
    %p50 = por %p48, %p49
    %p51 = scmp.ne.s32.totalorder %s43, %s45
    %p52 = scmp.eq.s32.totalorder %s14, 1
    %p53 = por %p51, %p52
    %p54 = scmp.ne.s32.totalorder %s45, %s46
    %p55 = scmp.eq.s32.totalorder %s14, 0
    %p56 = por %p54, %p55
    %p57 = scmp.ne.s32.totalorder %s45, %s46
    %p58 = scmp.eq.s32.totalorder %s15, 1
    %p59 = por %p57, %p58
    %p61 = scmp.ne.s32.totalorder %s46, %s60
    %p62 = scmp.eq.s32.totalorder %s15, 0
    %p63 = por %p61, %p62
    %s65 = sadd.s32 %s64, 1
    %p68 = scmp.eq.s32.totalorder %s9, 1
    %p69 = scmp.ne.s32.totalorder %s64, %s66
    %p70 = scmp.eq.s32.totalorder %s9, 0
    %p71 = por %p69, %p70
    %p72 = scmp.ne.s32.totalorder %s64, %s66
    %p73 = scmp.eq.s32.totalorder %s14, 1
    %p74 = por %p72, %p73
    %p75 = scmp.ne.s32.totalorder %s66, %s67
    %p76 = scmp.eq.s32.totalorder %s14, 0
    %p77 = por %p75, %p76
    %p78 = scmp.ne.s32.totalorder %s66, %s67
    %p79 = scmp.eq.s32.totalorder %s15, 1
    %p80 = por %p78, %p79
    %p82 = scmp.ne.s32.totalorder %s67, %s81
    %p83 = scmp.eq.s32.totalorder %s15, 0
    %p84 = por %p82, %p83
    %s85 = ssub.s32 %s9, %s16
    %p86 = scmp.eq.s32.totalorder %s85, 0
    %s88 = sadd.s32 %s87, 1
    %s89 = scalar_select %p86, %s87, %s88
    %p92 = pneg %p86
    %p93 = scmp.eq.s32.totalorder %s9, 1
    %p94 = por %p92, %p93
    %p95 = scmp.ne.s32.totalorder %s87, %s90
    %p96 = scmp.eq.s32.totalorder %s9, 0
    %p97 = por %p95, %p96
    %p98 = scmp.ne.s32.totalorder %s87, %s90
    %p99 = scmp.eq.s32.totalorder %s14, 1
    %p100 = por %p98, %p99
    %p101 = scmp.ne.s32.totalorder %s90, %s91
    %p102 = scmp.eq.s32.totalorder %s14, 0
    %p103 = por %p101, %p102
    %p104 = scmp.ne.s32.totalorder %s90, %s91
    %p105 = scmp.eq.s32.totalorder %s15, 1
    %p106 = por %p104, %p105
    %p108 = scmp.ne.s32.totalorder %s91, %s107
    %p109 = scmp.eq.s32.totalorder %s15, 0
    %p110 = por %p108, %p109
    %p111 = scmp.le.s32.totalorder 1, %s9
    %p112 = scmp.lt.s32.totalorder %s9, 3
    %p113 = pnand %p111, %p112
    %p114 = pneg %p113
    // Predicated region
    $region9: #{tpu_custom_call.1} parent=5 // pred_check
      _
    $region10: #{tpu_custom_call.1} parent=5 // pred_check_branch
      %116 = sbr.rel (%p113) target = $region12
    $region11: #{tpu_custom_call.1} parent=5 // pred_region
      %s117 = ssub.s32 %s9, 1
      // Predicated region
      $region13: #{tpu_custom_call.1} parent=11 // pred_check
        %p118 = pneg %p56
      $region14: #{tpu_custom_call.1} parent=11 // pred_check_branch
        %120 = sbr.rel (%p118) target = $region16
      $region15: #{tpu_custom_call.1} parent=11 // pred_region
        _
      $region16: #{tpu_custom_call.1} parent=11 // pred_fallthru
        _
      // Predicated region
      $region17: #{tpu_custom_call.1} parent=11 // pred_check
        %p121 = pneg %p77
      $region18: #{tpu_custom_call.1} parent=11 // pred_check_branch
        %123 = sbr.rel (%p121) target = $region20
      $region19: #{tpu_custom_call.1} parent=11 // pred_region
        _
      $region20: #{tpu_custom_call.1} parent=11 // pred_fallthru
        _
    $region12: #{tpu_custom_call.1} parent=5 // pred_fallthru
      _
    %p124 = scmp.lt.s32.totalorder %s9, 2
    // Predicated region
    $region21: #{tpu_custom_call.1} parent=5 // pred_check
      %p125 = pneg %p124
    $region22: #{tpu_custom_call.1} parent=5 // pred_check_branch
      %127 = sbr.rel (%p125) target = $region24
    $region23: #{tpu_custom_call.1} parent=5 // pred_region
      // Predicated region
      $region25: #{tpu_custom_call.1} parent=23 // pred_check
        %p128 = pneg %p29
      $region26: #{tpu_custom_call.1} parent=23 // pred_check_branch
        %130 = sbr.rel (%p128) target = $region28
      $region27: #{tpu_custom_call.1} parent=23 // pred_region
        %s131 = smul.u32 16, %s9
        %p132 = scmp.lt.s32.totalorder %s131, 31
        %s133 = scalar_select %p132, %s131, 31
        %s134 = smul.addr %s133, 8
        %s135 = scalar_lea.vmem %s0, %s134
        %s136 = smul.u32 16, %s9
      $region28: #{tpu_custom_call.1} parent=23 // pred_fallthru
        _
    $region24: #{tpu_custom_call.1} parent=5 // pred_fallthru
      _
    %p137 = scmp.le.s32.totalorder 1, %s9
    %p138 = scmp.lt.s32.totalorder %s9, 3
    %p139 = pnand %p137, %p138
    %p140 = pneg %p139
    // Predicated region
    $region29: #{tpu_custom_call.1} parent=5 // pred_check
      _
    $region30: #{tpu_custom_call.1} parent=5 // pred_check_branch
      %142 = sbr.rel (%p139) target = $region32
    $region31: #{tpu_custom_call.1} parent=5 // pred_region
      %s143 = ssub.s32 %s9, 1
      %s144 = smul.u32 16, %s14
      %p145 = scmp.lt.s32.totalorder %s144, 31
      %s146 = scalar_select %p145, %s144, 31
      %s147 = smul.addr %s146, 8
      %s148 = scalar_lea.vmem %s0, %s147
      %p149 = pneg %p35
      %p150 = pneg %p32
      %p151 = pneg %p56
      %p152 = pneg %p53
      %p153 = pneg %p77
      %p154 = pneg %p74
      %p155 = pneg %p103
      %p156 = pneg %p100
      %s157 = smul.u32 16, %s14
      %p158 = scmp.lt.s32.totalorder %s157, 31
      %s159 = scalar_select %p158, %s157, 31
      %s160 = smul.addr %s159, 8
      %s161 = scalar_lea.vmem %s3, %s160
      %s162 = smul.u32 16, %s14
      %p163 = scmp.lt.s32.totalorder %s162, 31
      %s164 = scalar_select %p163, %s162, 31
      %s165 = smul.addr %s164, 8
      %s166 = scalar_lea.vmem %s0, %s165
      %s167 = smul.u32 16, %s14
      %s168 = smul.u32 16, %s14
      %p169 = scmp.lt.s32.totalorder %s168, 31
      %s170 = scalar_select %p169, %s168, 31
      %s171 = smul.addr %s170, 8
      %s172 = scalar_lea.vmem %s3, %s171
      %s173 = smul.u32 16, %s14
      %v175 = vld [vmem:[%s166] sm:$0xff]
      %v176 = vld [vmem:[%s166 + $0x8] sm:$0xff]
      %v177 = vld [vmem:[%s166 + $0x10] sm:$0xff]
      %v178 = vld [vmem:[%s166 + $0x18] sm:$0xff]
      %v179 = vld [vmem:[%s166 + $0x20] sm:$0xff]
      %v180 = vld [vmem:[%s166 + $0x28] sm:$0xff]
      %v181 = vld [vmem:[%s166 + $0x30] sm:$0xff]
      %v182 = vld [vmem:[%s166 + $0x38] sm:$0xff]
      %v183 = vld [vmem:[%s166 + $0x40] sm:$0xff]
      %v184 = vld [vmem:[%s166 + $0x48] sm:$0xff]
      %v185 = vld [vmem:[%s166 + $0x50] sm:$0xff]
      %v186 = vld [vmem:[%s166 + $0x58] sm:$0xff]
      %v187 = vld [vmem:[%s166 + $0x60] sm:$0xff]
      %v188 = vld [vmem:[%s166 + $0x68] sm:$0xff]
      %v189 = vld [vmem:[%s166 + $0x70] sm:$0xff]
      %v190 = vld [vmem:[%s166 + $0x78] sm:$0xff]
      %v191 = vpack.c.bf16 %v176, %v175
      %v192 = vpack.c.bf16 %v178, %v177
      %v193 = vpack.c.bf16 %v180, %v179
      %v194 = vpack.c.bf16 %v182, %v181
      %v195 = vpack.c.bf16 %v184, %v183
      %v196 = vpack.c.bf16 %v186, %v185
      %v197 = vpack.c.bf16 %v188, %v187
      %v198 = vpack.c.bf16 %v190, %v189
      %v199 = vld [vmem:[%s1] sm:$0xf]
      %v200 = vld [vmem:[%s2] sm:$0x1]
      %v202 = vlaneseq
      %v203 = vshrl.u32 %v202, 7
      %v204 = vsub.s32 0, %v203
      %v205 = vrot.slane %v200, %v204
      %vm207 = vcmask 64512
      %v209 = vsel %vm207, %v191, 0
      %v212 = vsel %vm207, %v192, 0
      %v215 = vsel %vm207, %v193, 0
      %v218 = vsel %vm207, %v194, 0
      %v221 = vsel %vm207, %v195, 0
      %v224 = vsel %vm207, %v196, 0
      %v227 = vsel %vm207, %v197, 0
      %v230 = vsel %vm207, %v198, 0
      %vm232 = vcmask 1043456
      %v234 = vsel %vm232, %v199, 0
      %236 = vmatprep.subr.bf16.mxu0 0
      %237 = vmatpush1.bf16.msra.mxu0 %v234
      %238 = vmatprep.subr.bf16.mxu0 0
      %239 = vmatpush1.bf16.msra.mxu0 0
      %240 = vmatprep.subr.bf16.mxu0 0
      %241 = vmatpush1.bf16.msra.mxu0 0
      %242 = vmatprep.subr.bf16.mxu0 0
      %243 = vmatpush1.bf16.msra.mxu0 0
      %244 = vmatprep.subr.bf16.mxu0 0
      %245 = vmatpush1.bf16.msra.mxu0 0
      %246 = vmatprep.subr.bf16.mxu0 0
      %247 = vmatpush1.bf16.msra.mxu0 0
      %248 = vmatprep.subr.bf16.mxu0 0
      %249 = vmatpush1.bf16.msra.mxu0 0
      %250 = vmatprep.subr.bf16.mxu0 0
      %251 = vmatpush1.bf16.msra.mxu0 0
      %252 = vmatprep.subr.bf16.mxu0 0
      %253 = vmatpush1.bf16.msra.mxu0 0
      %254 = vmatprep.subr.bf16.mxu0 0
      %255 = vmatpush1.bf16.msra.mxu0 0
      %256 = vmatprep.subr.bf16.mxu0 0
      %257 = vmatpush1.bf16.msra.mxu0 0
      %258 = vmatprep.subr.bf16.mxu0 0
      %259 = vmatpush1.bf16.msra.mxu0 0
      %260 = vmatprep.subr.bf16.mxu0 0
      %261 = vmatpush1.bf16.msra.mxu0 0
      %262 = vmatprep.subr.bf16.mxu0 0
      %263 = vmatpush1.bf16.msra.mxu0 0
      %264 = vmatprep.subr.bf16.mxu0 0
      %265 = vmatpush1.bf16.msra.mxu0 0
      %266 = vmatprep.subr.bf16.mxu0 0
      %267 = vmatpush1.bf16.msra.mxu0 0
      %268 = vmatprep.mubr.bf16.mxu0 0
      %269 = vmatmul.mubr.bf16.gmra.mrb[0].mxu0 %v209
      %v270 = vpop.f32.mrb[0].mxu0
      %v271 = vadd.f32 %v205, %v270
      %v272 = vpop.f32.mrb[0].mxu0
      %v273 = vpop.f32.mrb[0].mxu0
      %v274 = vadd.f32 %v205, %v273
      %v275 = vpop.f32.mrb[0].mxu0
      %276 = vmatprep.mubr.bf16.mxu0 0
      %277 = vmatmul.mubr.bf16.gmra.mrb[0].mxu0 %v212
      %v278 = vpop.f32.mrb[0].mxu0
      %v279 = vadd.f32 %v205, %v278
      %v280 = vpop.f32.mrb[0].mxu0
      %v281 = vpop.f32.mrb[0].mxu0
      %v282 = vadd.f32 %v205, %v281
      %v283 = vpop.f32.mrb[0].mxu0
      %284 = vmatprep.mubr.bf16.mxu0 0
      %285 = vmatmul.mubr.bf16.gmra.mrb[0].mxu0 %v215
      %v286 = vpop.f32.mrb[0].mxu0
      %v287 = vadd.f32 %v205, %v286
      %v288 = vpop.f32.mrb[0].mxu0
      %v289 = vpop.f32.mrb[0].mxu0
      %v290 = vadd.f32 %v205, %v289
      %v291 = vpop.f32.mrb[0].mxu0
      %292 = vmatprep.mubr.bf16.mxu0 0
      %293 = vmatmul.mubr.bf16.gmra.mrb[0].mxu0 %v218
      %v294 = vpop.f32.mrb[0].mxu0
      %v295 = vadd.f32 %v205, %v294
      %v296 = vpop.f32.mrb[0].mxu0
      %v297 = vpop.f32.mrb[0].mxu0
      %v298 = vadd.f32 %v205, %v297
      %v299 = vpop.f32.mrb[0].mxu0
      %300 = vmatprep.mubr.bf16.mxu0 0
      %301 = vmatmul.mubr.bf16.gmra.mrb[0].mxu0 %v221
      %v302 = vpop.f32.mrb[0].mxu0
      %v303 = vadd.f32 %v205, %v302
      %v304 = vpop.f32.mrb[0].mxu0
      %v305 = vpop.f32.mrb[0].mxu0
      %v306 = vadd.f32 %v205, %v305
      %v307 = vpop.f32.mrb[0].mxu0
      %308 = vmatprep.mubr.bf16.mxu0 0
      %309 = vmatmul.mubr.bf16.gmra.mrb[0].mxu0 %v224
      %v310 = vpop.f32.mrb[0].mxu0
      %v311 = vadd.f32 %v205, %v310
      %v312 = vpop.f32.mrb[0].mxu0
      %v313 = vpop.f32.mrb[0].mxu0
      %v314 = vadd.f32 %v205, %v313
      %v315 = vpop.f32.mrb[0].mxu0
      %316 = vmatprep.mubr.bf16.mxu0 0
      %317 = vmatmul.mubr.bf16.gmra.mrb[0].mxu0 %v227
      %v318 = vpop.f32.mrb[0].mxu0
      %v319 = vadd.f32 %v205, %v318
      %v320 = vpop.f32.mrb[0].mxu0
      %v321 = vpop.f32.mrb[0].mxu0
      %v322 = vadd.f32 %v205, %v321
      %v323 = vpop.f32.mrb[0].mxu0
      %324 = vmatprep.mubr.bf16.mxu0 0
      %325 = vmatmul.mubr.bf16.gmra.mrb[0].mxu0 %v230
      %v326 = vpop.f32.mrb[0].mxu0
      %v327 = vadd.f32 %v205, %v326
      %v328 = vpop.f32.mrb[0].mxu0
      %v329 = vpop.f32.mrb[0].mxu0
      %v330 = vadd.f32 %v205, %v329
      %v331 = vpop.f32.mrb[0].mxu0
      %332 = vdwg.mxu0
      %v333 = vmax.f32 %v271, 0.0
      %v334 = vmax.f32 %v274, 0.0
      %v335 = vmax.f32 %v279, 0.0
      %v336 = vmax.f32 %v282, 0.0
      %v337 = vmax.f32 %v287, 0.0
      %v338 = vmax.f32 %v290, 0.0
      %v339 = vmax.f32 %v295, 0.0
      %v340 = vmax.f32 %v298, 0.0
      %v341 = vmax.f32 %v303, 0.0
      %v342 = vmax.f32 %v306, 0.0
      %v343 = vmax.f32 %v311, 0.0
      %v344 = vmax.f32 %v314, 0.0
      %v345 = vmax.f32 %v319, 0.0
      %v346 = vmax.f32 %v322, 0.0
      %v347 = vmax.f32 %v327, 0.0
      %v348 = vmax.f32 %v330, 0.0
      %vm349 = vcmask 261120
      %350 = vst.msk [vmem:[%s172] sm:$0xff] %vm349, %v333
      %351 = vst.msk [vmem:[%s172 + $0x8] sm:$0xff] %vm349, %v334
      %352 = vst.msk [vmem:[%s172 + $0x10] sm:$0xff] %vm349, %v335
      %353 = vst.msk [vmem:[%s172 + $0x18] sm:$0xff] %vm349, %v336
      %354 = vst.msk [vmem:[%s172 + $0x20] sm:$0xff] %vm349, %v337
      %355 = vst.msk [vmem:[%s172 + $0x28] sm:$0xff] %vm349, %v338
      %356 = vst.msk [vmem:[%s172 + $0x30] sm:$0xff] %vm349, %v339
      %357 = vst.msk [vmem:[%s172 + $0x38] sm:$0xff] %vm349, %v340
      %358 = vst.msk [vmem:[%s172 + $0x40] sm:$0xff] %vm349, %v341
      %359 = vst.msk [vmem:[%s172 + $0x48] sm:$0xff] %vm349, %v342
      %360 = vst.msk [vmem:[%s172 + $0x50] sm:$0xff] %vm349, %v343
      %361 = vst.msk [vmem:[%s172 + $0x58] sm:$0xff] %vm349, %v344
      %362 = vst.msk [vmem:[%s172 + $0x60] sm:$0xff] %vm349, %v345
      %363 = vst.msk [vmem:[%s172 + $0x68] sm:$0xff] %vm349, %v346
      %364 = vst.msk [vmem:[%s172 + $0x70] sm:$0xff] %vm349, %v347
      %365 = vst.msk [vmem:[%s172 + $0x78] sm:$0xff] %vm349, %v348
      %s366 = smul.u32 16, %s14
      %p367 = scmp.lt.s32.totalorder %s366, 31
      %s368 = scalar_select %p367, %s366, 31
      %s369 = smul.addr %s368, 8
      %s370 = scalar_lea.vmem %s3, %s369
      // Predicated region
      $region33: #{tpu_custom_call.1} parent=31 // pred_check
        %p371 = pneg %p100
      $region34: #{tpu_custom_call.1} parent=31 // pred_check_branch
        %373 = sbr.rel (%p371) target = $region36
      $region35: #{tpu_custom_call.1} parent=31 // pred_region
        %s374 = smul.u32 16, %s14
      $region36: #{tpu_custom_call.1} parent=31 // pred_fallthru
        _
    $region32: #{tpu_custom_call.1} parent=5 // pred_fallthru
      _
    %p375 = scmp.le.s32.totalorder 2, %s9
    // Predicated region
    $region37: #{tpu_custom_call.1} parent=5 // pred_check
      %p376 = pneg %p375
    $region38: #{tpu_custom_call.1} parent=5 // pred_check_branch
      %378 = sbr.rel (%p376) target = $region40
    $region39: #{tpu_custom_call.1} parent=5 // pred_region
      %s379 = ssub.s32 %s9, 2
      // Predicated region
      $region41: #{tpu_custom_call.1} parent=39 // pred_check
        %p380 = pneg %p106
      $region42: #{tpu_custom_call.1} parent=39 // pred_check_branch
        %382 = sbr.rel (%p380) target = $region44
      $region43: #{tpu_custom_call.1} parent=39 // pred_region
        %s383 = smul.u32 16, %s15
        %p384 = scmp.lt.s32.totalorder %s383, 31
        %s385 = scalar_select %p384, %s383, 31
        %s386 = smul.addr %s385, 8
        %s387 = scalar_lea.vmem %s3, %s386
      $region44: #{tpu_custom_call.1} parent=39 // pred_fallthru
        _
    $region40: #{tpu_custom_call.1} parent=5 // pred_fallthru
      _
  $region6: #{tpu_custom_call.1} parent=0 // loop_footer
    %s13 = sadd.s32 1, %s9
  $region7: #{tpu_custom_call.1} parent=0 // loop_footer_branch
    %8 = sbr.rel target = $region3
  $region8: #{tpu_custom_call.1} parent=0 // loop_exit
    _

</llo_original>
